<compile_context>
chip_gen: v6e
topology: v6e:2x2x1
jax: 0.10.0
libtpu: 0.0.40
codegen_flags: <defaults>
</compile_context>

<pallas_src>
import functools

import jax
import jax.numpy as jnp
from jax.experimental import pallas as pl
from jax.experimental.pallas import tpu as pltpu


def mlp_softmax_kernel(s_ref, w1_ref, b1_ref, w2_ref, b2_ref, o_ref):
    # fc1 (bf16 MXU inputs, f32 accumulate) + bias + ReLU in f32
    h = jnp.dot(s_ref[...], w1_ref[...], preferred_element_type=jnp.float32)
    h = jnp.maximum(h + b1_ref[...], 0.0)
    # fc2 (cast activation back to bf16 for the MXU, f32 accumulate) + bias
    logits = jnp.dot(h.astype(w2_ref.dtype), w2_ref[...],
                     preferred_element_type=jnp.float32)
    logits = logits + b2_ref[...]
    # softmax over the class axis (PyTorch F.softmax on 2-D -> dim=1), f32 math
    m = jnp.max(logits, axis=-1, keepdims=True)
    e = jnp.exp(logits - m)
    denom = jnp.sum(e, axis=-1, keepdims=True)
    # Exact reciprocal (approx=False) keeps row sums == 1 to f32 precision.
    o_ref[...] = (e * pl.reciprocal(denom, approx=False)).astype(o_ref.dtype)


@functools.partial(jax.jit, static_argnames=("tile_m",))
def simple_nn_classifier(s, w1, b1, w2, b2, *, tile_m=128):
    """s: (M, H) float32; returns (M, C) float32 softmax probabilities."""
    M, H = s.shape
    C = w2.shape[1]

    # Tile the batch dim. Either the full batch (small M) or a multiple of 8
    # (sublane requirement) that keeps the grid >= 1.
    if M <= tile_m:
        tile_m = M
    grid = (pl.cdiv(M, tile_m),)

    # bf16 at the boundary for MXU inputs; biases stay f32.
    s_bf = s.astype(jnp.bfloat16)
    w1_bf = w1.astype(jnp.bfloat16)
    w2_bf = w2.astype(jnp.bfloat16)

    # VMEM budget: double-buffered s tile + double-buffered out tile
    # + resident weights/biases, with generous headroom.
    tile_bytes = (2 * (tile_m * H * 2)          # s tile, bf16, double-buffered
                  + 2 * (tile_m * C * 4)        # out tile, f32, double-buffered
                  + H * H * 2 + H * C * 2       # resident W1 / W2 (bf16)
                  + H * 4 + C * 4)              # resident biases (f32)
    vmem_limit = int(min(max(4 * tile_bytes, 1 << 20), 64 << 20))

    cost = pl.CostEstimate(
        flops=2 * M * H * H + 2 * M * H * C,
        transcendentals=M * C,
        bytes_accessed=(M * H * 2 + H * H * 2 + H * C * 2
                        + H * 4 + C * 4 + M * C * 4),
    )

    return pl.pallas_call(
        mlp_softmax_kernel,
        out_shape=jax.ShapeDtypeStruct((M, C), jnp.float32),
        grid=grid,
        in_specs=[
            pl.BlockSpec((tile_m, H), lambda i: (i, 0)),   # s: tiled over batch
            pl.BlockSpec((H, H), lambda i: (0, 0)),        # W1: resident
            pl.BlockSpec((1, H), lambda i: (0, 0)),        # b1: resident
            pl.BlockSpec((H, C), lambda i: (0, 0)),        # W2: resident
            pl.BlockSpec((1, C), lambda i: (0, 0)),        # b2: resident
        ],
        out_specs=pl.BlockSpec((tile_m, C), lambda i: (i, 0)),
        compiler_params=pltpu.CompilerParams(
            dimension_semantics=("parallel",),
            vmem_limit_bytes=vmem_limit,
        ),
        cost_estimate=cost,
    )(s_bf, w1_bf, b1, w2_bf, b2)


def init_params(key, hidden, output_dim):
    """Deterministic init mimicking nn.Linear default (uniform +-1/sqrt(fan_in))."""
    k1, k2, k3, k4 = jax.random.split(key, 4)
    bound1 = 1.0 / jnp.sqrt(hidden)
    w1 = jax.random.uniform(k1, (hidden, hidden), jnp.float32, -bound1, bound1)
    b1 = jax.random.uniform(k2, (1, hidden), jnp.float32, -bound1, bound1)
    bound2 = 1.0 / jnp.sqrt(hidden)
    w2 = jax.random.uniform(k3, (hidden, output_dim), jnp.float32, -bound2, bound2)
    b2 = jax.random.uniform(k4, (1, output_dim), jnp.float32, -bound2, bound2)
    return w1, b1, w2, b2


def reference(s, w1, b1, w2, b2):
    h = jnp.maximum(s @ w1 + b1, 0.0)
    logits = h @ w2 + b2
    return jax.nn.softmax(logits, axis=-1)


if __name__ == "__main__":
    # Batch sized so the grid actually tiles (256 rows -> 2 tiles of 128);
    # hidden / output_dim match the module's config.hidden / config.output_dim.
    batch = 256
    hidden = 32
    output_dim = 16

    key = jax.random.PRNGKey(0)
    k_in, k_par = jax.random.split(key)
    s = jax.random.normal(k_in, (batch, hidden), jnp.float32)
    w1, b1, w2, b2 = init_params(k_par, hidden, output_dim)

    out = simple_nn_classifier(s, w1, b1, w2, b2)
    out = jax.block_until_ready(out)

    # sanity: shape, rows of a softmax sum to 1, and agreement with f32 reference
    assert out.shape == (batch, output_dim)
    assert jnp.allclose(jnp.sum(out, axis=-1), 1.0, atol=1e-5)
    ref = reference(s, w1, b1, w2, b2)
    assert jnp.allclose(out, ref, atol=5e-2)  # bf16 matmul inputs, f32 accumulate

    print("KERNEL_OK")
</pallas_src>

<mosaic_0001>
module attributes {stable_mosaic.version = 11 : i64} {
  func.func @mlp_softmax_kernel(%arg0: i32, %arg1: memref<128x32xbf16, #tpu.memory_space<vmem>>, %arg2: memref<32x32xbf16, #tpu.memory_space<vmem>>, %arg3: memref<1x32xf32, #tpu.memory_space<vmem>>, %arg4: memref<32x16xbf16, #tpu.memory_space<vmem>>, %arg5: memref<1x16xf32, #tpu.memory_space<vmem>>, %arg6: memref<128x16xf32, #tpu.memory_space<vmem>>) attributes {dimension_semantics = [#tpu.dimension_semantics<parallel>], iteration_bounds = array<i64: 2>, scalar_prefetch = 0 : i64, scratch_operands = 0 : i64, tpu.core_type = #tpu.core_type<tc>, window_params = [{transform_indices = @transform_0, window_bounds = array<i64: 128, 32>}, {pipeline_mode = #tpu.pipeline_mode<synchronous>, transform_indices = @transform_1, window_bounds = array<i64: 32, 32>}, {pipeline_mode = #tpu.pipeline_mode<synchronous>, transform_indices = @transform_2, window_bounds = array<i64: 1, 32>}, {pipeline_mode = #tpu.pipeline_mode<synchronous>, transform_indices = @transform_3, window_bounds = array<i64: 32, 16>}, {pipeline_mode = #tpu.pipeline_mode<synchronous>, transform_indices = @transform_4, window_bounds = array<i64: 1, 16>}, {transform_indices = @transform_5, window_bounds = array<i64: 128, 16>}]} {
    %c0 = arith.constant 0 : index
    %c0_0 = arith.constant 0 : index
    %0 = vector.load %arg1[%c0, %c0_0] : memref<128x32xbf16, #tpu.memory_space<vmem>>, vector<128x32xbf16>
    %c0_1 = arith.constant 0 : index
    %c0_2 = arith.constant 0 : index
    %1 = vector.load %arg2[%c0_1, %c0_2] : memref<32x32xbf16, #tpu.memory_space<vmem>>, vector<32x32xbf16>
    %cst = arith.constant dense<0.000000e+00> : vector<128x32xf32>
    %2 = tpu.matmul %0, %1, %cst {dimension_numbers = #tpu.dot_dimension_numbers<[1], [0], [0], [1], [0, 0, 1, 1], [], []>} : vector<128x32xbf16>, vector<32x32xbf16>, vector<128x32xf32> -> vector<128x32xf32>
    %c0_3 = arith.constant 0 : index
    %c0_4 = arith.constant 0 : index
    %3 = vector.load %arg3[%c0_3, %c0_4] : memref<1x32xf32, #tpu.memory_space<vmem>>, vector<1x32xf32>
    %4 = vector.broadcast %3 : vector<1x32xf32> to vector<128x32xf32>
    %5 = arith.addf %2, %4 : vector<128x32xf32>
    %cst_5 = arith.constant 0.000000e+00 : f32
    %6 = vector.broadcast %cst_5 : f32 to vector<128x32xf32>
    %7 = arith.maximumf %5, %6 : vector<128x32xf32>
    %8 = arith.truncf %7 : vector<128x32xf32> to vector<128x32xbf16>
    %c0_6 = arith.constant 0 : index
    %c0_7 = arith.constant 0 : index
    %9 = vector.load %arg4[%c0_6, %c0_7] : memref<32x16xbf16, #tpu.memory_space<vmem>>, vector<32x16xbf16>
    %cst_8 = arith.constant dense<0.000000e+00> : vector<128x16xf32>
    %10 = tpu.matmul %8, %9, %cst_8 {dimension_numbers = #tpu.dot_dimension_numbers<[1], [0], [0], [1], [0, 0, 1, 1], [], []>} : vector<128x32xbf16>, vector<32x16xbf16>, vector<128x16xf32> -> vector<128x16xf32>
    %c0_9 = arith.constant 0 : index
    %c0_10 = arith.constant 0 : index
    %11 = vector.load %arg5[%c0_9, %c0_10] : memref<1x16xf32, #tpu.memory_space<vmem>>, vector<1x16xf32>
    %12 = vector.broadcast %11 : vector<1x16xf32> to vector<128x16xf32>
    %13 = arith.addf %10, %12 : vector<128x16xf32>
    %cst_11 = arith.constant dense<0xFF800000> : vector<128xf32>
    %14 = vector.multi_reduction <maximumf>, %13, %cst_11 [1] : vector<128x16xf32> to vector<128xf32>
    %15 = vector.shape_cast %14 : vector<128xf32> to vector<128x1xf32>
    %16 = vector.broadcast %15 : vector<128x1xf32> to vector<128x16xf32>
    %17 = arith.subf %13, %16 : vector<128x16xf32>
    %18 = math.exp %17 : vector<128x16xf32>
    %cst_12 = arith.constant dense<0.000000e+00> : vector<128xf32>
    %19 = vector.multi_reduction <add>, %18, %cst_12 [1] : vector<128x16xf32> to vector<128xf32>
    %20 = vector.shape_cast %19 : vector<128xf32> to vector<128x1xf32>
    %21 = tpu.reciprocal %20 : vector<128x1xf32> -> vector<128x1xf32>
    %22 = vector.broadcast %21 : vector<128x1xf32> to vector<128x16xf32>
    %23 = arith.mulf %18, %22 : vector<128x16xf32>
    %c0_13 = arith.constant 0 : index
    %c0_14 = arith.constant 0 : index
    %24 = vector.load %arg6[%c0_13, %c0_14] : memref<128x16xf32, #tpu.memory_space<vmem>>, vector<128x16xf32>
    tpu.vector_store %arg6[%c0_13, %c0_14], %23 {strides = array<i32>} : memref<128x16xf32, #tpu.memory_space<vmem>>, vector<128x16xf32>,
    return
  }
  func.func @transform_0(%arg0: i32) -> (i32, i32) {
    %c0_i32 = arith.constant 0 : i32
    %c0_i32_0 = arith.constant 0 : i32
    return %arg0, %c0_i32 : i32, i32
  }
  func.func @transform_1(%arg0: i32) -> (i32, i32) {
    %c0_i32 = arith.constant 0 : i32
    %c0_i32_0 = arith.constant 0 : i32
    %c0_i32_1 = arith.constant 0 : i32
    return %c0_i32, %c0_i32_0 : i32, i32
  }
  func.func @transform_2(%arg0: i32) -> (i32, i32) {
    %c0_i32 = arith.constant 0 : i32
    %c0_i32_0 = arith.constant 0 : i32
    %c0_i32_1 = arith.constant 0 : i32
    return %c0_i32, %c0_i32_0 : i32, i32
  }
  func.func @transform_3(%arg0: i32) -> (i32, i32) {
    %c0_i32 = arith.constant 0 : i32
    %c0_i32_0 = arith.constant 0 : i32
    %c0_i32_1 = arith.constant 0 : i32
    return %c0_i32, %c0_i32_0 : i32, i32
  }
  func.func @transform_4(%arg0: i32) -> (i32, i32) {
    %c0_i32 = arith.constant 0 : i32
    %c0_i32_0 = arith.constant 0 : i32
    %c0_i32_1 = arith.constant 0 : i32
    return %c0_i32, %c0_i32_0 : i32, i32
  }
  func.func @transform_5(%arg0: i32) -> (i32, i32) {
    %c0_i32 = arith.constant 0 : i32
    %c0_i32_0 = arith.constant 0 : i32
    return %arg0, %c0_i32 : i32, i32
  }
}

</mosaic_0001>

<llo_original>
// kernel: simple_nn_classifier.1
$region0: #{simple_nn_classifier.1}
  #allocation0 [shape = 'u32[]', space=smem, size = 0x4, offset = 0x4, fixed_abs, tag = 'smem constant byte address 0x4 - core index']
  #allocation1 [shape = 'u32[144,128]{1,0:T(1,128)}', space=vmem, size = 0x12000, scoped, tag = 'internal scratch']
  %s0 = inlined_call_operand.vmem [shape: bf16[256,32], index: 0, kind: input, shape index: {}]
  %s1 = inlined_call_operand.vmem [shape: bf16[32,32], index: 1, kind: input, shape index: {}]
  %s2 = inlined_call_operand.vmem [shape: f32[1,32], index: 2, kind: input, shape index: {}]
  %s3 = inlined_call_operand.vmem [shape: bf16[32,16], index: 3, kind: input, shape index: {}]
  %s4 = inlined_call_operand.vmem [shape: f32[1,16], index: 4, kind: input, shape index: {}]
  %s5 = inlined_call_operand.vmem [shape: f32[256,16], index: 5, kind: output, shape index: {}]
  %s6 = sld [smem:[#allocation0]]
  $region53: #{simple_nn_classifier.1} parent=0
    _
  %s8 = ssub.s32 1, %s6
  %s9 = scalar_select 0, %s8, %s6
  loop: start=0, step=1, limit=4
  $region2: #{simple_nn_classifier.1} parent=0 // loop_pre_header
    _
  $region3: #{simple_nn_classifier.1} parent=0 // loop_header
    %s11 = sphi 0, %s15
    %p12 = scmp.ge.s32.totalorder %s11, 4
    %s21 = sphi 0, %s23
    %s24 = sphi 0, %s21
    %s25 = sphi 0, %s24
    %s41 = sphi 0, %s25
    %s45 = sphi 0, %s45
    %s47 = sphi 0, %s45
    %s48 = sphi 0, %s47
    %s62 = sphi 0, %s48
    %s66 = sphi 0, %s66
    %s68 = sphi 0, %s66
    %s69 = sphi 0, %s68
    %s83 = sphi 0, %s69
    %s87 = sphi 0, %s87
    %s89 = sphi 0, %s87
    %s90 = sphi 0, %s89
    %s104 = sphi 0, %s90
    %s108 = sphi 0, %s108
    %s110 = sphi 0, %s108
    %s111 = sphi 0, %s110
    %s125 = sphi 0, %s111
    %s131 = sphi 0, %s133
    %s134 = sphi 0, %s131
    %s135 = sphi 0, %s134
    %s151 = sphi 0, %s135
  $region4: #{simple_nn_classifier.1} parent=0 // loop_header_branch
    %14 = sbr.rel (%p12) target = $region8
  $region5: #{simple_nn_classifier.1} parent=0 // loop_body
    %s16 = ssub.s32 %s11, 1
    %s17 = ssub.s32 %s11, 2
    %s18 = sadd.s32 %s11, 1
    %s19 = ssub.s32 %s11, %s18
    %p20 = scmp.eq.s32.totalorder %s19, 0
    %s22 = sadd.s32 %s21, 1
    %s23 = scalar_select %p20, %s21, %s22
    %p26 = pneg %p20
    %p27 = scmp.eq.s32.totalorder %s11, 1
    %p28 = por %p26, %p27
    %p29 = scmp.ne.s32.totalorder %s21, %s24
    %p30 = scmp.eq.s32.totalorder %s11, 0
    %p31 = por %p29, %p30
    %p32 = scmp.ne.s32.totalorder %s21, %s24
    %p33 = scmp.eq.s32.totalorder %s16, 1
    %p34 = por %p32, %p33
    %p35 = scmp.ne.s32.totalorder %s24, %s25
    %p36 = scmp.eq.s32.totalorder %s16, 0
    %p37 = por %p35, %p36
    %p38 = scmp.ne.s32.totalorder %s24, %s25
    %p39 = scmp.eq.s32.totalorder %s17, 1
    %p40 = por %p38, %p39
    %p42 = scmp.ne.s32.totalorder %s25, %s41
    %p43 = scmp.eq.s32.totalorder %s17, 0
    %p44 = por %p42, %p43
    %s46 = sadd.s32 %s45, 1
    %p49 = scmp.eq.s32.totalorder %s11, 1
    %p50 = scmp.ne.s32.totalorder %s45, %s47
    %p51 = scmp.eq.s32.totalorder %s11, 0
    %p52 = por %p50, %p51
    %p53 = scmp.ne.s32.totalorder %s45, %s47
    %p54 = scmp.eq.s32.totalorder %s16, 1
    %p55 = por %p53, %p54
    %p56 = scmp.ne.s32.totalorder %s47, %s48
    %p57 = scmp.eq.s32.totalorder %s16, 0
    %p58 = por %p56, %p57
    %p59 = scmp.ne.s32.totalorder %s47, %s48
    %p60 = scmp.eq.s32.totalorder %s17, 1
    %p61 = por %p59, %p60
    %p63 = scmp.ne.s32.totalorder %s48, %s62
    %p64 = scmp.eq.s32.totalorder %s17, 0
    %p65 = por %p63, %p64
    %s67 = sadd.s32 %s66, 1
    %p70 = scmp.eq.s32.totalorder %s11, 1
    %p71 = scmp.ne.s32.totalorder %s66, %s68
    %p72 = scmp.eq.s32.totalorder %s11, 0
    %p73 = por %p71, %p72
    %p74 = scmp.ne.s32.totalorder %s66, %s68
    %p75 = scmp.eq.s32.totalorder %s16, 1
    %p76 = por %p74, %p75
    %p77 = scmp.ne.s32.totalorder %s68, %s69
    %p78 = scmp.eq.s32.totalorder %s16, 0
    %p79 = por %p77, %p78
    %p80 = scmp.ne.s32.totalorder %s68, %s69
    %p81 = scmp.eq.s32.totalorder %s17, 1
    %p82 = por %p80, %p81
    %p84 = scmp.ne.s32.totalorder %s69, %s83
    %p85 = scmp.eq.s32.totalorder %s17, 0
    %p86 = por %p84, %p85
    %s88 = sadd.s32 %s87, 1
    %p91 = scmp.eq.s32.totalorder %s11, 1
    %p92 = scmp.ne.s32.totalorder %s87, %s89
    %p93 = scmp.eq.s32.totalorder %s11, 0
    %p94 = por %p92, %p93
    %p95 = scmp.ne.s32.totalorder %s87, %s89
    %p96 = scmp.eq.s32.totalorder %s16, 1
    %p97 = por %p95, %p96
    %p98 = scmp.ne.s32.totalorder %s89, %s90
    %p99 = scmp.eq.s32.totalorder %s16, 0
    %p100 = por %p98, %p99
    %p101 = scmp.ne.s32.totalorder %s89, %s90
    %p102 = scmp.eq.s32.totalorder %s17, 1
    %p103 = por %p101, %p102
    %p105 = scmp.ne.s32.totalorder %s90, %s104
    %p106 = scmp.eq.s32.totalorder %s17, 0
    %p107 = por %p105, %p106
    %s109 = sadd.s32 %s108, 1
    %p112 = scmp.eq.s32.totalorder %s11, 1
    %p113 = scmp.ne.s32.totalorder %s108, %s110
    %p114 = scmp.eq.s32.totalorder %s11, 0
    %p115 = por %p113, %p114
    %p116 = scmp.ne.s32.totalorder %s108, %s110
    %p117 = scmp.eq.s32.totalorder %s16, 1
    %p118 = por %p116, %p117
    %p119 = scmp.ne.s32.totalorder %s110, %s111
    %p120 = scmp.eq.s32.totalorder %s16, 0
    %p121 = por %p119, %p120
    %p122 = scmp.ne.s32.totalorder %s110, %s111
    %p123 = scmp.eq.s32.totalorder %s17, 1
    %p124 = por %p122, %p123
    %p126 = scmp.ne.s32.totalorder %s111, %s125
    %p127 = scmp.eq.s32.totalorder %s17, 0
    %p128 = por %p126, %p127
    %s129 = ssub.s32 %s11, %s18
    %p130 = scmp.eq.s32.totalorder %s129, 0
    %s132 = sadd.s32 %s131, 1
    %s133 = scalar_select %p130, %s131, %s132
    %p136 = pneg %p130
    %p137 = scmp.eq.s32.totalorder %s11, 1
    %p138 = por %p136, %p137
    %p139 = scmp.ne.s32.totalorder %s131, %s134
    %p140 = scmp.eq.s32.totalorder %s11, 0
    %p141 = por %p139, %p140
    %p142 = scmp.ne.s32.totalorder %s131, %s134
    %p143 = scmp.eq.s32.totalorder %s16, 1
    %p144 = por %p142, %p143
    %p145 = scmp.ne.s32.totalorder %s134, %s135
    %p146 = scmp.eq.s32.totalorder %s16, 0
    %p147 = por %p145, %p146
    %p148 = scmp.ne.s32.totalorder %s134, %s135
    %p149 = scmp.eq.s32.totalorder %s17, 1
    %p150 = por %p148, %p149
    %p152 = scmp.ne.s32.totalorder %s135, %s151
    %p153 = scmp.eq.s32.totalorder %s17, 0
    %p154 = por %p152, %p153
    %p155 = scmp.le.s32.totalorder 1, %s11
    %p156 = scmp.lt.s32.totalorder %s11, 3
    %p157 = pnand %p155, %p156
    %p158 = pneg %p157
    // Predicated region
    $region9: #{simple_nn_classifier.1} parent=5 // pred_check
      _
    $region10: #{simple_nn_classifier.1} parent=5 // pred_check_branch
      %160 = sbr.rel (%p157) target = $region12
    $region11: #{simple_nn_classifier.1} parent=5 // pred_region
      %s161 = ssub.s32 %s11, 1
      // Predicated region
      $region13: #{simple_nn_classifier.1} parent=11 // pred_check
        %p162 = pneg %p58
      $region14: #{simple_nn_classifier.1} parent=11 // pred_check_branch
        %164 = sbr.rel (%p162) target = $region16
      $region15: #{simple_nn_classifier.1} parent=11 // pred_region
        _
      $region16: #{simple_nn_classifier.1} parent=11 // pred_fallthru
        _
      // Predicated region
      $region17: #{simple_nn_classifier.1} parent=11 // pred_check
        %p165 = pneg %p79
      $region18: #{simple_nn_classifier.1} parent=11 // pred_check_branch
        %167 = sbr.rel (%p165) target = $region20
      $region19: #{simple_nn_classifier.1} parent=11 // pred_region
        _
      $region20: #{simple_nn_classifier.1} parent=11 // pred_fallthru
        _
      // Predicated region
      $region21: #{simple_nn_classifier.1} parent=11 // pred_check
        %p168 = pneg %p100
      $region22: #{simple_nn_classifier.1} parent=11 // pred_check_branch
        %170 = sbr.rel (%p168) target = $region24
      $region23: #{simple_nn_classifier.1} parent=11 // pred_region
        _
      $region24: #{simple_nn_classifier.1} parent=11 // pred_fallthru
        _
      // Predicated region
      $region25: #{simple_nn_classifier.1} parent=11 // pred_check
        %p171 = pneg %p121
      $region26: #{simple_nn_classifier.1} parent=11 // pred_check_branch
        %173 = sbr.rel (%p171) target = $region28
      $region27: #{simple_nn_classifier.1} parent=11 // pred_region
        _
      $region28: #{simple_nn_classifier.1} parent=11 // pred_fallthru
        _
    $region12: #{simple_nn_classifier.1} parent=5 // pred_fallthru
      _
    %p174 = scmp.lt.s32.totalorder %s11, 2
    // Predicated region
    $region29: #{simple_nn_classifier.1} parent=5 // pred_check
      %p175 = pneg %p174
    $region30: #{simple_nn_classifier.1} parent=5 // pred_check_branch
      %177 = sbr.rel (%p175) target = $region32
    $region31: #{simple_nn_classifier.1} parent=5 // pred_region
      // Predicated region
      $region33: #{simple_nn_classifier.1} parent=31 // pred_check
        %p178 = pneg %p31
      $region34: #{simple_nn_classifier.1} parent=31 // pred_check_branch
        %180 = sbr.rel (%p178) target = $region36
      $region35: #{simple_nn_classifier.1} parent=31 // pred_region
        %s181 = smul.u32 16, %s11
        %p182 = scmp.lt.s32.totalorder %s181, 31
        %s183 = scalar_select %p182, %s181, 31
        %s184 = smul.addr %s183, 4
        %s185 = scalar_lea.vmem %s0, %s184
        %s186 = smul.u32 16, %s11
      $region36: #{simple_nn_classifier.1} parent=31 // pred_fallthru
        _
    $region32: #{simple_nn_classifier.1} parent=5 // pred_fallthru
      _
    %p187 = scmp.le.s32.totalorder 1, %s11
    %p188 = scmp.lt.s32.totalorder %s11, 3
    %p189 = pnand %p187, %p188
    %p190 = pneg %p189
    // Predicated region
    $region37: #{simple_nn_classifier.1} parent=5 // pred_check
      _
    $region38: #{simple_nn_classifier.1} parent=5 // pred_check_branch
      %192 = sbr.rel (%p189) target = $region40
    $region39: #{simple_nn_classifier.1} parent=5 // pred_region
      %s193 = ssub.s32 %s11, 1
      %s194 = smul.u32 16, %s16
      %p195 = scmp.lt.s32.totalorder %s194, 31
      %s196 = scalar_select %p195, %s194, 31
      %s197 = smul.addr %s196, 4
      %s198 = scalar_lea.vmem %s0, %s197
      %p199 = pneg %p37
      %p200 = pneg %p34
      %p201 = pneg %p58
      %p202 = pneg %p55
      %p203 = pneg %p79
      %p204 = pneg %p76
      %p205 = pneg %p100
      %p206 = pneg %p97
      %p207 = pneg %p121
      %p208 = pneg %p118
      %p209 = pneg %p147
      %p210 = pneg %p144
      %s211 = smul.u32 16, %s16
      %p212 = scmp.lt.s32.totalorder %s211, 31
      %s213 = scalar_select %p212, %s211, 31
      %s214 = smul.addr %s213, 8
      %s215 = scalar_lea.vmem %s5, %s214
      %s216 = smul.u32 16, %s16
      %p217 = scmp.lt.s32.totalorder %s216, 31
      %s218 = scalar_select %p217, %s216, 31
      %s219 = smul.addr %s218, 4
      %s220 = scalar_lea.vmem %s0, %s219
      %s221 = smul.u32 16, %s16
      %s222 = smul.u32 16, %s16
      %p223 = scmp.lt.s32.totalorder %s222, 31
      %s224 = scalar_select %p223, %s222, 31
      %s225 = smul.addr %s224, 8
      %s226 = scalar_lea.vmem %s5, %s225
      %s227 = smul.u32 16, %s16
      %v229 = vld [vmem:[%s220] sm:$0xf]
      %v230 = vld [vmem:[%s220 + $0x4] sm:$0xf]
      %v231 = vld [vmem:[%s220 + $0x8] sm:$0xf]
      %v232 = vld [vmem:[%s220 + $0xc] sm:$0xf]
      %v233 = vld [vmem:[%s220 + $0x10] sm:$0xf]
      %v234 = vld [vmem:[%s220 + $0x14] sm:$0xf]
      %v235 = vld [vmem:[%s220 + $0x18] sm:$0xf]
      %v236 = vld [vmem:[%s220 + $0x1c] sm:$0xf]
      %v237 = vld [vmem:[%s220 + $0x20] sm:$0xf]
      %v238 = vld [vmem:[%s220 + $0x24] sm:$0xf]
      %v239 = vld [vmem:[%s220 + $0x28] sm:$0xf]
      %v240 = vld [vmem:[%s220 + $0x2c] sm:$0xf]
      %v241 = vld [vmem:[%s220 + $0x30] sm:$0xf]
      %v242 = vld [vmem:[%s220 + $0x34] sm:$0xf]
      %v243 = vld [vmem:[%s220 + $0x38] sm:$0xf]
      %v244 = vld [vmem:[%s220 + $0x3c] sm:$0xf]
      %v245 = vld [vmem:[%s1] sm:$0xf]
      %v246 = vld [vmem:[%s1 + $0x4] sm:$0xf]
      %v247 = vld [vmem:[%s1 + $0x8] sm:$0xf]
      %v248 = vld [vmem:[%s1 + $0xc] sm:$0xf]
      %v249 = vld [vmem:[%s2] sm:$0x1]
      %v251 = vlaneseq
      %v252 = vshrl.u32 %v251, 7
      %v253 = vsub.s32 0, %v252
      %v254 = vrot.slane %v249, %v253
      %v272 = vunpack.c.l.b16 %v229
      %v273 = vunpack.c.l.b16 %v230
      %v274 = vunpack.c.l.b16 %v231
      %v275 = vunpack.c.l.b16 %v232
      %v276 = vunpack.c.l.b16 %v233
      %v277 = vunpack.c.l.b16 %v234
      %v278 = vunpack.c.l.b16 %v235
      %v279 = vunpack.c.l.b16 %v236
      %v280 = vunpack.c.l.b16 %v237
      %v281 = vunpack.c.l.b16 %v238
      %v282 = vunpack.c.l.b16 %v239
      %v283 = vunpack.c.l.b16 %v240
      %v284 = vunpack.c.l.b16 %v241
      %v285 = vunpack.c.l.b16 %v242
      %v286 = vunpack.c.l.b16 %v243
      %v287 = vunpack.c.l.b16 %v244
      %v288 = vpack.c.b16 %v273, %v272
      %v289 = vpack.c.b16 %v275, %v274
      %v290 = vpack.c.b16 %v277, %v276
      %v291 = vpack.c.b16 %v279, %v278
      %v292 = vpack.c.b16 %v281, %v280
      %v293 = vpack.c.b16 %v283, %v282
      %v294 = vpack.c.b16 %v285, %v284
      %v295 = vpack.c.b16 %v287, %v286
      %v300 = vunpack.c.l.b16 %v245
      %v301 = vunpack.c.l.b16 %v246
      %v302 = vunpack.c.l.b16 %v247
      %v303 = vunpack.c.l.b16 %v248
      %v304 = vpack.c.b16 %v301, %v300
      %v305 = vpack.c.b16 %v303, %v302
      %vm308 = vcmask 261120
      %v310 = vsel %vm308, %v288, 0
      %v313 = vsel %vm308, %v289, 0
      %v316 = vsel %vm308, %v290, 0
      %v319 = vsel %vm308, %v291, 0
      %v322 = vsel %vm308, %v292, 0
      %v325 = vsel %vm308, %v293, 0
      %v328 = vsel %vm308, %v294, 0
      %v331 = vsel %vm308, %v295, 0
      %333 = vmatprep.subr.bf16.mxu0 0
      %334 = vmatpush1.bf16.msra.mxu0 0
      %335 = vmatprep.subr.bf16.mxu0 0
      %336 = vmatpush1.bf16.msra.mxu0 0
      %337 = vmatprep.subr.bf16.mxu0 0
      %338 = vmatpush1.bf16.msra.mxu0 0
      %339 = vmatprep.subr.bf16.mxu0 0
      %340 = vmatpush1.bf16.msra.mxu0 0
      %341 = vmatprep.subr.bf16.mxu0 0
      %342 = vmatpush1.bf16.msra.mxu0 0
      %343 = vmatprep.subr.bf16.mxu0 0
      %344 = vmatpush1.bf16.msra.mxu0 0
      %345 = vmatprep.subr.bf16.mxu0 0
      %346 = vmatpush1.bf16.msra.mxu0 %v305
      %347 = vmatprep.subr.bf16.mxu0 0
      %348 = vmatpush1.bf16.msra.mxu0 %v304
      %349 = vmatprep.subr.bf16.mxu0 0
      %350 = vmatpush2.bf16.msra.mxu0 0
      %351 = vmatprep.subr.bf16.mxu0 0
      %352 = vmatpush2.bf16.msra.mxu0 0
      %353 = vmatprep.subr.bf16.mxu0 0
      %354 = vmatpush2.bf16.msra.mxu0 0
      %355 = vmatprep.subr.bf16.mxu0 0
      %356 = vmatpush2.bf16.msra.mxu0 0
      %357 = vmatprep.subr.bf16.mxu0 0
      %358 = vmatpush2.bf16.msra.mxu0 0
      %359 = vmatprep.subr.bf16.mxu0 0
      %360 = vmatpush2.bf16.msra.mxu0 0
      %361 = vmatprep.subr.bf16.mxu0 0
      %362 = vmatpush2.bf16.msra.mxu0 0
      %363 = vmatprep.subr.bf16.mxu0 0
      %364 = vmatpush2.bf16.msra.mxu0 0
      %365 = vmatprep.mubr.bf16.mxu0 0
      %366 = vmatmul.mubr.bf16.gmra.mxu0 %v310
      %v367 = vpop.f32.mrf.mxu0
      %v368 = vadd.f32 %v254, %v367
      %v369 = vpop.f32.mrf.mxu0
      %v370 = vpop.f32.mrf.mxu0
      %v371 = vadd.f32 %v254, %v370
      %v372 = vpop.f32.mrf.mxu0
      %373 = vmatprep.mubr.bf16.mxu0 0
      %374 = vmatmul.mubr.bf16.gmra.mxu0 %v313
      %v375 = vpop.f32.mrf.mxu0
      %v376 = vadd.f32 %v254, %v375
      %v377 = vpop.f32.mrf.mxu0
      %v378 = vpop.f32.mrf.mxu0
      %v379 = vadd.f32 %v254, %v378
      %v380 = vpop.f32.mrf.mxu0
      %381 = vmatprep.mubr.bf16.mxu0 0
      %382 = vmatmul.mubr.bf16.gmra.mxu0 %v316
      %v383 = vpop.f32.mrf.mxu0
      %v384 = vadd.f32 %v254, %v383
      %v385 = vpop.f32.mrf.mxu0
      %v386 = vpop.f32.mrf.mxu0
      %v387 = vadd.f32 %v254, %v386
      %v388 = vpop.f32.mrf.mxu0
      %389 = vmatprep.mubr.bf16.mxu0 0
      %390 = vmatmul.mubr.bf16.gmra.mxu0 %v319
      %v391 = vpop.f32.mrf.mxu0
      %v392 = vadd.f32 %v254, %v391
      %v393 = vpop.f32.mrf.mxu0
      %v394 = vpop.f32.mrf.mxu0
      %v395 = vadd.f32 %v254, %v394
      %v396 = vpop.f32.mrf.mxu0
      %397 = vmatprep.mubr.bf16.mxu0 0
      %398 = vmatmul.mubr.bf16.gmra.mxu0 %v322
      %v399 = vpop.f32.mrf.mxu0
      %v400 = vadd.f32 %v254, %v399
      %v401 = vpop.f32.mrf.mxu0
      %v402 = vpop.f32.mrf.mxu0
      %v403 = vadd.f32 %v254, %v402
      %v404 = vpop.f32.mrf.mxu0
      %405 = vmatprep.mubr.bf16.mxu0 0
      %406 = vmatmul.mubr.bf16.gmra.mxu0 %v325
      %v407 = vpop.f32.mrf.mxu0
      %v408 = vadd.f32 %v254, %v407
      %v409 = vpop.f32.mrf.mxu0
      %v410 = vpop.f32.mrf.mxu0
      %v411 = vadd.f32 %v254, %v410
      %v412 = vpop.f32.mrf.mxu0
      %413 = vmatprep.mubr.bf16.mxu0 0
      %414 = vmatmul.mubr.bf16.gmra.mxu0 %v328
      %v415 = vpop.f32.mrf.mxu0
      %v416 = vadd.f32 %v254, %v415
      %v417 = vpop.f32.mrf.mxu0
      %v418 = vpop.f32.mrf.mxu0
      %v419 = vadd.f32 %v254, %v418
      %v420 = vpop.f32.mrf.mxu0
      %421 = vmatprep.mubr.bf16.mxu0 0
      %422 = vmatmul.mubr.bf16.gmra.mxu0 %v331
      %v423 = vpop.f32.mrf.mxu0
      %v424 = vadd.f32 %v254, %v423
      %v425 = vpop.f32.mrf.mxu0
      %v426 = vpop.f32.mrf.mxu0
      %v427 = vadd.f32 %v254, %v426
      %v428 = vpop.f32.mrf.mxu0
      %429 = vdwg.mxu0
      %v430 = vmax.f32 %v368, 0.0
      %v431 = vmax.f32 %v371, 0.0
      %v432 = vmax.f32 %v376, 0.0
      %v433 = vmax.f32 %v379, 0.0
      %v434 = vmax.f32 %v384, 0.0
      %v435 = vmax.f32 %v387, 0.0
      %v436 = vmax.f32 %v392, 0.0
      %v437 = vmax.f32 %v395, 0.0
      %v438 = vmax.f32 %v400, 0.0
      %v439 = vmax.f32 %v403, 0.0
      %v440 = vmax.f32 %v408, 0.0
      %v441 = vmax.f32 %v411, 0.0
      %v442 = vmax.f32 %v416, 0.0
      %v443 = vmax.f32 %v419, 0.0
      %v444 = vmax.f32 %v424, 0.0
      %v445 = vmax.f32 %v427, 0.0
      %v446 = vpack.c.bf16 %v431, %v430
      %v447 = vpack.c.bf16 %v433, %v432
      %v448 = vpack.c.bf16 %v435, %v434
      %v449 = vpack.c.bf16 %v437, %v436
      %v450 = vpack.c.bf16 %v439, %v438
      %v451 = vpack.c.bf16 %v441, %v440
      %v452 = vpack.c.bf16 %v443, %v442
      %v453 = vpack.c.bf16 %v445, %v444
      %v454 = vld [vmem:[%s3] sm:$0xf]
      %v455 = vld [vmem:[%s3 + $0x4] sm:$0xf]
      %v456 = vld [vmem:[%s3 + $0x8] sm:$0xf]
      %v457 = vld [vmem:[%s3 + $0xc] sm:$0xf]
      %v458 = vld [vmem:[%s4] sm:$0x1]
      %v460 = vlaneseq
      %v461 = vshrl.u32 %v460, 7
      %v462 = vsub.s32 0, %v461
      %v463 = vrot.slane %v458, %v462
      %v469 = vunpack.c.l.b16 %v454
      %v470 = vunpack.c.l.b16 %v455
      %v471 = vunpack.c.l.b16 %v456
      %v472 = vunpack.c.l.b16 %v457
      %v473 = vpack.c.b16 %v470, %v469
      %v474 = vpack.c.b16 %v472, %v471
      %v478 = vsel %vm308, %v446, 0
      %v481 = vsel %vm308, %v447, 0
      %v484 = vsel %vm308, %v448, 0
      %v487 = vsel %vm308, %v449, 0
      %v490 = vsel %vm308, %v450, 0
      %v493 = vsel %vm308, %v451, 0
      %v496 = vsel %vm308, %v452, 0
      %v499 = vsel %vm308, %v453, 0
      %501 = vmatprep.subr.bf16.mxu0 0
      %502 = vmatpush1.bf16.msra.mxu0 0
      %503 = vmatprep.subr.bf16.mxu0 0
      %504 = vmatpush1.bf16.msra.mxu0 0
      %505 = vmatprep.subr.bf16.mxu0 0
      %506 = vmatpush1.bf16.msra.mxu0 0
      %507 = vmatprep.subr.bf16.mxu0 0
      %508 = vmatpush1.bf16.msra.mxu0 0
      %509 = vmatprep.subr.bf16.mxu0 0
      %510 = vmatpush1.bf16.msra.mxu0 0
      %511 = vmatprep.subr.bf16.mxu0 0
      %512 = vmatpush1.bf16.msra.mxu0 0
      %513 = vmatprep.subr.bf16.mxu0 0
      %514 = vmatpush1.bf16.msra.mxu0 %v474
      %515 = vmatprep.subr.bf16.mxu0 0
      %516 = vmatpush1.bf16.msra.mxu0 %v473
      %517 = vmatprep.subr.bf16.mxu0 0
      %518 = vmatpush2.bf16.msra.mxu0 0
      %519 = vmatprep.subr.bf16.mxu0 0
      %520 = vmatpush2.bf16.msra.mxu0 0
      %521 = vmatprep.subr.bf16.mxu0 0
      %522 = vmatpush2.bf16.msra.mxu0 0
      %523 = vmatprep.subr.bf16.mxu0 0
      %524 = vmatpush2.bf16.msra.mxu0 0
      %525 = vmatprep.subr.bf16.mxu0 0
      %526 = vmatpush2.bf16.msra.mxu0 0
      %527 = vmatprep.subr.bf16.mxu0 0
      %528 = vmatpush2.bf16.msra.mxu0 0
      %529 = vmatprep.subr.bf16.mxu0 0
      %530 = vmatpush2.bf16.msra.mxu0 0
      %531 = vmatprep.subr.bf16.mxu0 0
      %532 = vmatpush2.bf16.msra.mxu0 0
      %533 = vmatprep.mubr.bf16.mxu0 0
      %534 = vmatmul.mubr.bf16.gmra.mxu0 %v478
      %v535 = vpop.f32.mrf.mxu0
      %v536 = vadd.f32 %v463, %v535
      %v537 = vpop.f32.mrf.mxu0
      %v538 = vpop.f32.mrf.mxu0
      %v539 = vadd.f32 %v463, %v538
      %v540 = vpop.f32.mrf.mxu0
      %541 = vmatprep.mubr.bf16.mxu0 0
      %542 = vmatmul.mubr.bf16.gmra.mxu0 %v481
      %v543 = vpop.f32.mrf.mxu0
      %v544 = vadd.f32 %v463, %v543
      %v545 = vpop.f32.mrf.mxu0
      %v546 = vpop.f32.mrf.mxu0
      %v547 = vadd.f32 %v463, %v546
      %v548 = vpop.f32.mrf.mxu0
      %549 = vmatprep.mubr.bf16.mxu0 0
      %550 = vmatmul.mubr.bf16.gmra.mxu0 %v484
      %v551 = vpop.f32.mrf.mxu0
      %v552 = vadd.f32 %v463, %v551
      %v553 = vpop.f32.mrf.mxu0
      %v554 = vpop.f32.mrf.mxu0
      %v555 = vadd.f32 %v463, %v554
      %v556 = vpop.f32.mrf.mxu0
      %557 = vmatprep.mubr.bf16.mxu0 0
      %558 = vmatmul.mubr.bf16.gmra.mxu0 %v487
      %v559 = vpop.f32.mrf.mxu0
      %v560 = vadd.f32 %v463, %v559
      %v561 = vpop.f32.mrf.mxu0
      %v562 = vpop.f32.mrf.mxu0
      %v563 = vadd.f32 %v463, %v562
      %v564 = vpop.f32.mrf.mxu0
      %565 = vmatprep.mubr.bf16.mxu0 0
      %566 = vmatmul.mubr.bf16.gmra.mxu0 %v490
      %v567 = vpop.f32.mrf.mxu0
      %v568 = vadd.f32 %v463, %v567
      %v569 = vpop.f32.mrf.mxu0
      %v570 = vpop.f32.mrf.mxu0
      %v571 = vadd.f32 %v463, %v570
      %v572 = vpop.f32.mrf.mxu0
      %573 = vmatprep.mubr.bf16.mxu0 0
      %574 = vmatmul.mubr.bf16.gmra.mxu0 %v493
      %v575 = vpop.f32.mrf.mxu0
      %v576 = vadd.f32 %v463, %v575
      %v577 = vpop.f32.mrf.mxu0
      %v578 = vpop.f32.mrf.mxu0
      %v579 = vadd.f32 %v463, %v578
      %v580 = vpop.f32.mrf.mxu0
      %581 = vmatprep.mubr.bf16.mxu0 0
      %582 = vmatmul.mubr.bf16.gmra.mxu0 %v496
      %v583 = vpop.f32.mrf.mxu0
      %v584 = vadd.f32 %v463, %v583
      %v585 = vpop.f32.mrf.mxu0
      %v586 = vpop.f32.mrf.mxu0
      %v587 = vadd.f32 %v463, %v586
      %v588 = vpop.f32.mrf.mxu0
      %589 = vmatprep.mubr.bf16.mxu0 0
      %590 = vmatmul.mubr.bf16.gmra.mxu0 %v499
      %v591 = vpop.f32.mrf.mxu0
      %v592 = vadd.f32 %v463, %v591
      %v593 = vpop.f32.mrf.mxu0
      %v594 = vpop.f32.mrf.mxu0
      %v595 = vadd.f32 %v463, %v594
      %v596 = vpop.f32.mrf.mxu0
      %597 = vdwg.mxu0
      %vm598 = vcmask 130048
      %v599 = vsel %vm598, %v536, -inf
      %600 = vmax.xlane.f32.xlu0 %v599
      %v601 = vpop.xlane.xlu0 %600
      %v602 = vsel %vm598, %v539, -inf
      %603 = vmax.xlane.f32.xlu0 %v602
      %v604 = vpop.xlane.xlu0 %603
      %v605 = vsel %vm598, %v544, -inf
      %606 = vmax.xlane.f32.xlu0 %v605
      %v607 = vpop.xlane.xlu0 %606
      %v608 = vsel %vm598, %v547, -inf
      %609 = vmax.xlane.f32.xlu0 %v608
      %v610 = vpop.xlane.xlu0 %609
      %v611 = vsel %vm598, %v552, -inf
      %612 = vmax.xlane.f32.xlu0 %v611
      %v613 = vpop.xlane.xlu0 %612
      %v614 = vsel %vm598, %v555, -inf
      %615 = vmax.xlane.f32.xlu0 %v614
      %v616 = vpop.xlane.xlu0 %615
      %v617 = vsel %vm598, %v560, -inf
      %618 = vmax.xlane.f32.xlu0 %v617
      %v619 = vpop.xlane.xlu0 %618
      %v620 = vsel %vm598, %v563, -inf
      %621 = vmax.xlane.f32.xlu0 %v620
      %v622 = vpop.xlane.xlu0 %621
      %v623 = vsel %vm598, %v568, -inf
      %624 = vmax.xlane.f32.xlu0 %v623
      %v625 = vpop.xlane.xlu0 %624
      %v626 = vsel %vm598, %v571, -inf
      %627 = vmax.xlane.f32.xlu0 %v626
      %v628 = vpop.xlane.xlu0 %627
      %v629 = vsel %vm598, %v576, -inf
      %630 = vmax.xlane.f32.xlu0 %v629
      %v631 = vpop.xlane.xlu0 %630
      %v632 = vsel %vm598, %v579, -inf
      %633 = vmax.xlane.f32.xlu0 %v632
      %v634 = vpop.xlane.xlu0 %633
      %v635 = vsel %vm598, %v584, -inf
      %636 = vmax.xlane.f32.xlu0 %v635
      %v637 = vpop.xlane.xlu0 %636
      %v638 = vsel %vm598, %v587, -inf
      %639 = vmax.xlane.f32.xlu0 %v638
      %v640 = vpop.xlane.xlu0 %639
      %v641 = vsel %vm598, %v592, -inf
      %642 = vmax.xlane.f32.xlu0 %v641
      %v643 = vpop.xlane.xlu0 %642
      %v644 = vsel %vm598, %v595, -inf
      %645 = vmax.xlane.f32.xlu0 %v644
      %v646 = vpop.xlane.xlu0 %645
      %v647 = vsub.f32 %v536, %v601
      %v648 = vsub.f32 %v539, %v604
      %v649 = vsub.f32 %v544, %v607
      %v650 = vsub.f32 %v547, %v610
      %v651 = vsub.f32 %v552, %v613
      %v652 = vsub.f32 %v555, %v616
      %v653 = vsub.f32 %v560, %v619
      %v654 = vsub.f32 %v563, %v622
      %v655 = vsub.f32 %v568, %v625
      %v656 = vsub.f32 %v571, %v628
      %v657 = vsub.f32 %v576, %v631
      %v658 = vsub.f32 %v579, %v634
      %v659 = vsub.f32 %v584, %v637
      %v660 = vsub.f32 %v587, %v640
      %v661 = vsub.f32 %v592, %v643
      %v662 = vsub.f32 %v595, %v646
      %v663 = vmul.f32 %v647, 1.442695
      %v664 = vpow.pop %v663
      %v665 = vmul.f32 %v648, 1.442695
      %v666 = vpow.pop %v665
      %v667 = vmul.f32 %v649, 1.442695
      %v668 = vpow.pop %v667
      %v669 = vmul.f32 %v650, 1.442695
      %v670 = vpow.pop %v669
      %v671 = vmul.f32 %v651, 1.442695
      %v672 = vpow.pop %v671
      %v673 = vmul.f32 %v652, 1.442695
      %v674 = vpow.pop %v673
      %v675 = vmul.f32 %v653, 1.442695
      %v676 = vpow.pop %v675
      %v677 = vmul.f32 %v654, 1.442695
      %v678 = vpow.pop %v677
      %v679 = vmul.f32 %v655, 1.442695
      %v680 = vpow.pop %v679
      %v681 = vmul.f32 %v656, 1.442695
      %v682 = vpow.pop %v681
      %v683 = vmul.f32 %v657, 1.442695
      %v684 = vpow.pop %v683
      %v685 = vmul.f32 %v658, 1.442695
      %v686 = vpow.pop %v685
      %v687 = vmul.f32 %v659, 1.442695
      %v688 = vpow.pop %v687
      %v689 = vmul.f32 %v660, 1.442695
      %v690 = vpow.pop %v689
      %v691 = vmul.f32 %v661, 1.442695
      %v692 = vpow.pop %v691
      %v693 = vmul.f32 %v662, 1.442695
      %v694 = vpow.pop %v693
      %v695 = vsel %vm598, %v664, 0.0
      %696 = vadd.xlane.f32.xlu0 %v695
      %v697 = vpop.xlane.xlu0 %696
      %v698 = vsel %vm598, %v666, 0.0
      %699 = vadd.xlane.f32.xlu0 %v698
      %v700 = vpop.xlane.xlu0 %699
      %v701 = vsel %vm598, %v668, 0.0
      %702 = vadd.xlane.f32.xlu0 %v701
      %v703 = vpop.xlane.xlu0 %702
      %v704 = vsel %vm598, %v670, 0.0
      %705 = vadd.xlane.f32.xlu0 %v704
      %v706 = vpop.xlane.xlu0 %705
      %v707 = vsel %vm598, %v672, 0.0
      %708 = vadd.xlane.f32.xlu0 %v707
      %v709 = vpop.xlane.xlu0 %708
      %v710 = vsel %vm598, %v674, 0.0
      %711 = vadd.xlane.f32.xlu0 %v710
      %v712 = vpop.xlane.xlu0 %711
      %v713 = vsel %vm598, %v676, 0.0
      %714 = vadd.xlane.f32.xlu0 %v713
      %v715 = vpop.xlane.xlu0 %714
      %v716 = vsel %vm598, %v678, 0.0
      %717 = vadd.xlane.f32.xlu0 %v716
      %v718 = vpop.xlane.xlu0 %717
      %v719 = vsel %vm598, %v680, 0.0
      %720 = vadd.xlane.f32.xlu0 %v719
      %v721 = vpop.xlane.xlu0 %720
      %v722 = vsel %vm598, %v682, 0.0
      %723 = vadd.xlane.f32.xlu0 %v722
      %v724 = vpop.xlane.xlu0 %723
      %v725 = vsel %vm598, %v684, 0.0
      %726 = vadd.xlane.f32.xlu0 %v725
      %v727 = vpop.xlane.xlu0 %726
      %v728 = vsel %vm598, %v686, 0.0
      %729 = vadd.xlane.f32.xlu0 %v728
      %v730 = vpop.xlane.xlu0 %729
      %v731 = vsel %vm598, %v688, 0.0
      %732 = vadd.xlane.f32.xlu0 %v731
      %v733 = vpop.xlane.xlu0 %732
      %v734 = vsel %vm598, %v690, 0.0
      %735 = vadd.xlane.f32.xlu0 %v734
      %v736 = vpop.xlane.xlu0 %735
      %v737 = vsel %vm598, %v692, 0.0
      %738 = vadd.xlane.f32.xlu0 %v737
      %v739 = vpop.xlane.xlu0 %738
      %v740 = vsel %vm598, %v694, 0.0
      %741 = vadd.xlane.f32.xlu0 %v740
      %v742 = vpop.xlane.xlu0 %741
      %v743 = vrcp.pop %v697
      %v744 = vrcp.pop %v700
      %v745 = vrcp.pop %v703
      %v746 = vrcp.pop %v706
      %v747 = vrcp.pop %v709
      %v748 = vrcp.pop %v712
      %v749 = vrcp.pop %v715
      %v750 = vrcp.pop %v718
      %v751 = vrcp.pop %v721
      %v752 = vrcp.pop %v724
      %v753 = vrcp.pop %v727
      %v754 = vrcp.pop %v730
      %v755 = vrcp.pop %v733
      %v756 = vrcp.pop %v736
      %v757 = vrcp.pop %v739
      %v758 = vrcp.pop %v742
      %v759 = vmul.f32 %v664, %v743
      %v760 = vmul.f32 %v666, %v744
      %v761 = vmul.f32 %v668, %v745
      %v762 = vmul.f32 %v670, %v746
      %v763 = vmul.f32 %v672, %v747
      %v764 = vmul.f32 %v674, %v748
      %v765 = vmul.f32 %v676, %v749
      %v766 = vmul.f32 %v678, %v750
      %v767 = vmul.f32 %v680, %v751
      %v768 = vmul.f32 %v682, %v752
      %v769 = vmul.f32 %v684, %v753
      %v770 = vmul.f32 %v686, %v754
      %v771 = vmul.f32 %v688, %v755
      %v772 = vmul.f32 %v690, %v756
      %v773 = vmul.f32 %v692, %v757
      %v774 = vmul.f32 %v694, %v758
      %775 = vst.msk [vmem:[%s226] sm:$0xff] %vm598, %v759
      %776 = vst.msk [vmem:[%s226 + $0x8] sm:$0xff] %vm598, %v760
      %777 = vst.msk [vmem:[%s226 + $0x10] sm:$0xff] %vm598, %v761
      %778 = vst.msk [vmem:[%s226 + $0x18] sm:$0xff] %vm598, %v762
      %779 = vst.msk [vmem:[%s226 + $0x20] sm:$0xff] %vm598, %v763
      %780 = vst.msk [vmem:[%s226 + $0x28] sm:$0xff] %vm598, %v764
      %781 = vst.msk [vmem:[%s226 + $0x30] sm:$0xff] %vm598, %v765
      %782 = vst.msk [vmem:[%s226 + $0x38] sm:$0xff] %vm598, %v766
      %783 = vst.msk [vmem:[%s226 + $0x40] sm:$0xff] %vm598, %v767
      %784 = vst.msk [vmem:[%s226 + $0x48] sm:$0xff] %vm598, %v768
      %785 = vst.msk [vmem:[%s226 + $0x50] sm:$0xff] %vm598, %v769
      %786 = vst.msk [vmem:[%s226 + $0x58] sm:$0xff] %vm598, %v770
      %787 = vst.msk [vmem:[%s226 + $0x60] sm:$0xff] %vm598, %v771
      %788 = vst.msk [vmem:[%s226 + $0x68] sm:$0xff] %vm598, %v772
      %789 = vst.msk [vmem:[%s226 + $0x70] sm:$0xff] %vm598, %v773
      %790 = vst.msk [vmem:[%s226 + $0x78] sm:$0xff] %vm598, %v774
      %s791 = smul.u32 16, %s16
      %p792 = scmp.lt.s32.totalorder %s791, 31
      %s793 = scalar_select %p792, %s791, 31
      %s794 = smul.addr %s793, 8
      %s795 = scalar_lea.vmem %s5, %s794
      // Predicated region
      $region41: #{simple_nn_classifier.1} parent=39 // pred_check
        %p796 = pneg %p144
      $region42: #{simple_nn_classifier.1} parent=39 // pred_check_branch
        %798 = sbr.rel (%p796) target = $region44
      $region43: #{simple_nn_classifier.1} parent=39 // pred_region
        %s799 = smul.u32 16, %s16
      $region44: #{simple_nn_classifier.1} parent=39 // pred_fallthru
        _
    $region40: #{simple_nn_classifier.1} parent=5 // pred_fallthru
      _
    %p800 = scmp.le.s32.totalorder 2, %s11
    // Predicated region
    $region45: #{simple_nn_classifier.1} parent=5 // pred_check
      %p801 = pneg %p800
    $region46: #{simple_nn_classifier.1} parent=5 // pred_check_branch
      %803 = sbr.rel (%p801) target = $region48
    $region47: #{simple_nn_classifier.1} parent=5 // pred_region
      %s804 = ssub.s32 %s11, 2
      // Predicated region
      $region49: #{simple_nn_classifier.1} parent=47 // pred_check
        %p805 = pneg %p150
      $region50: #{simple_nn_classifier.1} parent=47 // pred_check_branch
        %807 = sbr.rel (%p805) target = $region52
      $region51: #{simple_nn_classifier.1} parent=47 // pred_region
        %s808 = smul.u32 16, %s17
        %p809 = scmp.lt.s32.totalorder %s808, 31
        %s810 = scalar_select %p809, %s808, 31
        %s811 = smul.addr %s810, 8
        %s812 = scalar_lea.vmem %s5, %s811
      $region52: #{simple_nn_classifier.1} parent=47 // pred_fallthru
        _
    $region48: #{simple_nn_classifier.1} parent=5 // pred_fallthru
      _
  $region6: #{simple_nn_classifier.1} parent=0 // loop_footer
    %s15 = sadd.s32 1, %s11
  $region7: #{simple_nn_classifier.1} parent=0 // loop_footer_branch
    %10 = sbr.rel target = $region3
  $region8: #{simple_nn_classifier.1} parent=0 // loop_exit
    _

</llo_original>
